<compile_context>
chip_gen: v6e
topology: v6e:2x2x1
jax: 0.10.0
libtpu: 0.0.40
codegen_flags: <defaults>
</compile_context>

<pallas_src>
import functools
import math

import jax
import jax.numpy as jnp
from jax.experimental import pallas as pl
from jax.experimental.pallas import tpu as pltpu

_SMEM = pltpu.MemorySpace.SMEM
_VMEM = pltpu.MemorySpace.VMEM

# ~2 MiB blocks: input+output double-buffered (4 live buffers) stays <= ~8 MiB,
# inside v5e's 16 MiB default scoped VMEM and well inside v7x's 64 MiB physical VMEM.
_DEFAULT_TARGET_BLOCK_BYTES = 2 * 1024 * 1024
# Below this total size a single fused block (reduce + quantize) beats two passes.
_DEFAULT_SMALL_FUSED_BYTES = 2 * 1024 * 1024
# Explicit scoped-VMEM limit: safe on v5e (128 MiB phys), v6e (128), v7x (64).
_VMEM_LIMIT_BYTES = 32 * 1024 * 1024


# ---------------------------------------------------------------------------
# Small helpers
# ---------------------------------------------------------------------------
def _round_half_away_from_zero(x):
    # Exactly equal to torch's Round: sign(x) * floor(|x| + 0.5), but cheaper.
    return jnp.where(x >= 0.0, jnp.floor(x + 0.5), jnp.ceil(x - 0.5))


def _lane_dense_2d(n_elems):
    """Pick a (rows, lanes) factorization with lanes a multiple of 128, if any."""
    for lanes in (1024, 2048, 4096, 512, 256, 128):
        if n_elems % lanes == 0:
            return (n_elems // lanes, lanes)
    return None


def _choose_block_rows(rows, lanes, itemsize, target_bytes):
    """Rows per block: a multiple of 8 (or all rows), sized so a block ~= target_bytes."""
    if rows <= 8:
        return rows
    per_row = max(1, lanes * itemsize)
    br = (int(target_bytes) // per_row) // 8 * 8
    if br < 8:
        br = 8
    if br >= rows:
        return rows          # single full block (allowed even if rows % 8 != 0)
    return br


# ---------------------------------------------------------------------------
# Kernels
# ---------------------------------------------------------------------------
def _lsq_per_tensor_fused_kernel(coef_ref, s_prev_ref, w_ref, s_out_ref, wq_ref,
                                 *, qn, qp, two_over_sqrt_qp):
    """Small weights: abs-mean + s update + quantize fused in one VMEM block."""
    w = w_ref[...].astype(jnp.float32)
    mean_abs = jnp.mean(jnp.abs(w))
    s_new = coef_ref[0] * s_prev_ref[0] + coef_ref[1] * (mean_abs * two_over_sqrt_qp)
    s_out_ref[0] = s_new
    # NOTE: if the weight is all-zero, s_new == 0 and wq becomes NaN/Inf — this
    # mirrors the torch code exactly.
    inv_s = 1.0 / s_new                       # one exact reciprocal, then multiplies
    q = jnp.clip(w * inv_s, qn, qp)
    q = _round_half_away_from_zero(q)
    wq_ref[...] = (q * s_new).astype(wq_ref.dtype)


def _quantize_per_tensor_kernel(s_ref, w_ref, wq_ref, *, qn, qp):
    """Large weights, phase 2: tiled quantize with the step size in SMEM."""
    s = s_ref[0]
    inv_s = 1.0 / s
    q = jnp.clip(w_ref[...].astype(jnp.float32) * inv_s, qn, qp)
    q = _round_half_away_from_zero(q)
    wq_ref[...] = (q * s).astype(wq_ref.dtype)


def _lsq_per_channel_kernel(coef_ref, s_prev_ref, w_ref, s_out_ref, wq_ref,
                            *, qn, qp, two_over_sqrt_qp):
    """Per-channel LSQ on a (BC, K) row block; per-row reduce stays single pass."""
    w = w_ref[...].astype(jnp.float32)                        # (BC, K)
    mean_abs = jnp.mean(jnp.abs(w), axis=1, keepdims=True)    # (BC, 1) lane reduce
    s_new = coef_ref[0] * s_prev_ref[...] + coef_ref[1] * (mean_abs * two_over_sqrt_qp)
    s_out_ref[...] = s_new
    inv_s = 1.0 / s_new                                       # BC exact divides, not BC*K
    q = jnp.clip(w * inv_s, qn, qp)                           # (BC,1) broadcast over lanes
    q = _round_half_away_from_zero(q)
    wq_ref[...] = (q * s_new).astype(wq_ref.dtype)


# ---------------------------------------------------------------------------
# Wrapper module (Python-side state mirrors the nn.Module)
# ---------------------------------------------------------------------------
class LSQWeightQuantizer:
    def __init__(self, w_bits, all_positive=False, per_channel=False, batch_init=20):
        assert w_bits != 1, "Binary quantization is not supported"
        assert w_bits != 32, "w_bits == 32 pass-through hits a NameError in the torch code"
        self.w_bits = w_bits
        self.all_positive = all_positive
        self.per_channel = per_channel
        self.batch_init = batch_init
        if all_positive:
            self.Qn = 0
            self.Qp = 2 ** w_bits - 1
        else:
            self.Qn = -(2 ** (w_bits - 1))
            self.Qp = 2 ** (w_bits - 1) - 1
        # torch: self.s = nn.Parameter(torch.ones(1))
        self.s = jnp.ones((1,), jnp.float32)
        self.init_state = 0
        self.g = None
        # Tunables (tests may shrink them to force the tiled paths).
        self._target_block_bytes = _DEFAULT_TARGET_BLOCK_BYTES
        self._small_fused_max_bytes = _DEFAULT_SMALL_FUSED_BYTES

    def _coefficients(self):
        if self.init_state == 0:
            return 0.0, 1.0            # fresh init of s
        elif self.init_state < self.batch_init:
            return 0.9, 0.1            # EMA update of s
        else:
            return 1.0, 0.0            # s frozen

    # -------------------------------------------------------------------
    def __call__(self, weight):
        orig_shape = weight.shape
        orig_dtype = weight.dtype                 # native-dtype I/O (no forced f32 pass)
        C = orig_shape[0]
        n_elems = int(weight.size)
        K = n_elems // C
        itemsize = weight.dtype.itemsize
        n_bytes = n_elems * itemsize

        if self.init_state == 0:
            self.g = 1.0 / math.sqrt(n_elems * self.Qp)   # only used by backward in torch

        c_old, c_new = self._coefficients()
        qn, qp = float(self.Qn), float(self.Qp)
        two_over_sqrt_qp = 2.0 / math.sqrt(self.Qp)

        if self.per_channel:
            wq = self._forward_per_channel(weight, C, K, itemsize, c_old, c_new,
                                           qn, qp, two_over_sqrt_qp, orig_dtype, orig_shape)
        else:
            wq = self._forward_per_tensor(weight, C, K, n_elems, n_bytes, itemsize,
                                          c_old, c_new, qn, qp, two_over_sqrt_qp,
                                          orig_dtype, orig_shape)

        if self.init_state <= self.batch_init:
            self.init_state += 1
        return wq

    # -------------------------------------------------------------------
    def _forward_per_channel(self, weight, C, K, itemsize, c_old, c_new,
                             qn, qp, two_over_sqrt_qp, orig_dtype, orig_shape):
        w2d = weight.reshape(C, K)
        if self.s.shape != (C, 1):
            # First call (or restored scalar state): broadcast the scalar s. Its value
            # only matters when c_old != 0.
            s_prev = jnp.full((C, 1), jnp.reshape(self.s, (-1,))[0], jnp.float32)
        else:
            s_prev = self.s.astype(jnp.float32)

        bc = _choose_block_rows(C, K, itemsize, self._target_block_bytes)
        grid = (pl.cdiv(C, bc),)
        coef = jnp.array([c_old, c_new], jnp.float32)
        kernel = functools.partial(_lsq_per_channel_kernel, qn=qn, qp=qp,
                                   two_over_sqrt_qp=two_over_sqrt_qp)

        s_new, wq2d = pl.pallas_call(
            kernel,
            grid=grid,
            out_shape=(jax.ShapeDtypeStruct((C, 1), jnp.float32),
                       jax.ShapeDtypeStruct((C, K), orig_dtype)),
            in_specs=[
                pl.BlockSpec(memory_space=_SMEM),                 # coef (whole, SMEM)
                pl.BlockSpec((bc, 1), lambda i: (i, 0)),          # s_prev row block
                pl.BlockSpec((bc, K), lambda i: (i, 0)),          # weight row block
            ],
            out_specs=(
                pl.BlockSpec((bc, 1), lambda i: (i, 0)),          # s_new row block
                pl.BlockSpec((bc, K), lambda i: (i, 0)),          # w_q row block
            ),
            compiler_params=pltpu.CompilerParams(
                dimension_semantics=("parallel",),                # v7x: split across 2 TCs
                vmem_limit_bytes=_VMEM_LIMIT_BYTES),
        )(coef, s_prev, w2d)

        self.s = s_new
        return wq2d.reshape(orig_shape)

    # -------------------------------------------------------------------
    def _forward_per_tensor(self, weight, C, K, n_elems, n_bytes, itemsize,
                            c_old, c_new, qn, qp, two_over_sqrt_qp,
                            orig_dtype, orig_shape):
        s_prev = jnp.reshape(self.s, (-1,))[:1].astype(jnp.float32)

        # Per-tensor has no row structure to preserve -> use a lane-dense slab so
        # output stores are full 128-lane vst's whenever the element count allows.
        slab = _lane_dense_2d(n_elems)
        if slab is None:
            slab = (C, K)
        R, L = slab
        w2d = weight.reshape(R, L)

        if n_bytes <= self._small_fused_max_bytes:
            # Small weight: single fused block; launch overhead dominates anyway.
            coef = jnp.array([c_old, c_new], jnp.float32)
            kernel = functools.partial(_lsq_per_tensor_fused_kernel, qn=qn, qp=qp,
                                       two_over_sqrt_qp=two_over_sqrt_qp)
            s_new, wq2d = pl.pallas_call(
                kernel,
                out_shape=(jax.ShapeDtypeStruct((1,), jnp.float32),
                           jax.ShapeDtypeStruct((R, L), orig_dtype)),
                in_specs=[pl.BlockSpec(memory_space=_SMEM),       # coef
                          pl.BlockSpec(memory_space=_SMEM),       # s_prev
                          pl.BlockSpec(memory_space=_VMEM)],      # weight (whole, small)
                out_specs=(pl.BlockSpec(memory_space=_SMEM),      # s_new
                           pl.BlockSpec(memory_space=_VMEM)),     # w_q
                compiler_params=pltpu.CompilerParams(
                    vmem_limit_bytes=_VMEM_LIMIT_BYTES),
            )(coef, s_prev, w2d)
        else:
            # Large weight: the global mean must be known before any element can be
            # quantized, so it can't be one tiled pass.
            # Phase 1: abs-mean reduction (plain XLA runs this at HBM roofline).
            mean_abs = jnp.mean(jnp.abs(weight), dtype=jnp.float32)
            s_new = (c_old * s_prev[0]
                     + c_new * (mean_abs * two_over_sqrt_qp)).reshape(1).astype(jnp.float32)
            # Phase 2: tiled, double-buffered quantize with s in SMEM.
            br = _choose_block_rows(R, L, itemsize, self._target_block_bytes)
            grid = (pl.cdiv(R, br),)
            kernel = functools.partial(_quantize_per_tensor_kernel, qn=qn, qp=qp)
            wq2d = pl.pallas_call(
                kernel,
                grid=grid,
                out_shape=jax.ShapeDtypeStruct((R, L), orig_dtype),
                in_specs=[pl.BlockSpec(memory_space=_SMEM),           # s (scalar)
                          pl.BlockSpec((br, L), lambda i: (i, 0))],   # weight row block
                out_specs=pl.BlockSpec((br, L), lambda i: (i, 0)),    # w_q row block
                compiler_params=pltpu.CompilerParams(
                    dimension_semantics=("parallel",),                # v7x: 2 TCs
                    vmem_limit_bytes=_VMEM_LIMIT_BYTES),
            )(s_new, w2d)

        self.s = s_new
        return wq2d.reshape(orig_shape)


# ---------------------------------------------------------------------------
# Pure-JAX reference (mirrors the torch forward exactly)
# ---------------------------------------------------------------------------
def _ref_forward(weight, s_prev, init_state, batch_init, w_bits, per_channel):
    Qn = -(2 ** (w_bits - 1))
    Qp = 2 ** (w_bits - 1) - 1
    C = weight.shape[0]
    w2d = weight.reshape(C, -1)
    if per_channel:
        m = jnp.mean(jnp.abs(w2d), axis=1, keepdims=True)
    else:
        m = jnp.mean(jnp.abs(weight))
    if init_state == 0:
        s = m * 2.0 / math.sqrt(Qp)
    elif init_state < batch_init:
        s = 0.9 * s_prev + 0.1 * m * 2.0 / math.sqrt(Qp)
    else:
        s = s_prev
    if per_channel:
        x = jnp.clip(w2d / s, Qn, Qp)
        x = jnp.sign(x) * jnp.floor(jnp.abs(x) + 0.5)
        wq = (x * s).reshape(weight.shape)
    else:
        x = jnp.clip(weight / s, Qn, Qp)
        x = jnp.sign(x) * jnp.floor(jnp.abs(x) + 0.5)
        wq = x * s
    return wq, s


# ---------------------------------------------------------------------------
if __name__ == "__main__":
    key = jax.random.PRNGKey(0)
    k1, k2 = jax.random.split(key)

    # --- Small conv weight, OIHW (16, 4, 3, 3): fused per-tensor path + single-block
    #     per-channel grid, exercising both the init and EMA branches. ---
    w_a = jax.random.normal(k1, (16, 4, 3, 3), dtype=jnp.float32) * 0.5

    q_pt = LSQWeightQuantizer(w_bits=4, per_channel=False, batch_init=20)
    wq1 = q_pt(w_a)
    jax.block_until_ready(wq1)
    ref1, _ = _ref_forward(w_a, jnp.float32(1.0), 0, 20, 4, False)
    assert jnp.allclose(wq1, ref1, atol=1e-5, rtol=1e-5), "per-tensor init mismatch"

    s_prev = q_pt.s[0]
    wq2 = q_pt(w_a * 1.1)
    jax.block_until_ready(wq2)
    ref2, _ = _ref_forward(w_a * 1.1, s_prev, 1, 20, 4, False)
    assert jnp.allclose(wq2, ref2, atol=1e-5, rtol=1e-5), "per-tensor EMA mismatch"

    q_pc = LSQWeightQuantizer(w_bits=4, per_channel=True, batch_init=20)
    wq3 = q_pc(w_a)
    jax.block_until_ready(wq3)
    ref3, _ = _ref_forward(w_a, jnp.ones((16, 1), jnp.float32), 0, 20, 4, True)
    assert jnp.allclose(wq3, ref3, atol=1e-5, rtol=1e-5), "per-channel init mismatch"

    s_prev_pc = q_pc.s
    wq4 = q_pc(w_a * 0.9)
    jax.block_until_ready(wq4)
    ref4, _ = _ref_forward(w_a * 0.9, s_prev_pc, 1, 20, 4, True)
    assert jnp.allclose(wq4, ref4, atol=1e-5, rtol=1e-5), "per-channel EMA mismatch"

    # --- Weight with C=20 (not a multiple of 8): forces the tiled, padded-grid paths
    #     by shrinking the tuning thresholds (same code path large weights take). ---
    w_b = jax.random.normal(k2, (20, 2, 3, 3), dtype=jnp.float32) * 0.5

    q_pt_b = LSQWeightQuantizer(w_bits=4, per_channel=False, batch_init=20)
    q_pt_b._small_fused_max_bytes = 0       # force the two-phase tiled per-tensor path
    q_pt_b._target_block_bytes = 512        # force a multi-block (padded) grid
    wq5 = q_pt_b(w_b)
    jax.block_until_ready(wq5)
    ref5, _ = _ref_forward(w_b, jnp.float32(1.0), 0, 20, 4, False)
    assert jnp.allclose(wq5, ref5, atol=1e-5, rtol=1e-5), "tiled per-tensor mismatch"

    q_pc_b = LSQWeightQuantizer(w_bits=4, per_channel=True, batch_init=20)
    q_pc_b._target_block_bytes = 512        # force a multi-block (padded) grid over C
    wq6 = q_pc_b(w_b)
    jax.block_until_ready(wq6)
    ref6, _ = _ref_forward(w_b, jnp.ones((20, 1), jnp.float32), 0, 20, 4, True)
    assert jnp.allclose(wq6, ref6, atol=1e-5, rtol=1e-5), "tiled per-channel mismatch"

    print("KERNEL_OK")
</pallas_src>

<mosaic_0001>
module attributes {stable_mosaic.version = 11 : i64} {
  func.func @_lsq_per_tensor_fused_kernel(%arg0: memref<2xf32, #tpu.memory_space<smem>>, %arg1: memref<1xf32, #tpu.memory_space<smem>>, %arg2: memref<16x36xf32, #tpu.memory_space<vmem>>, %arg3: memref<1xf32, #tpu.memory_space<smem>>, %arg4: memref<16x36xf32, #tpu.memory_space<vmem>>) attributes {dimension_semantics = [], scalar_prefetch = 0 : i64, scratch_operands = 0 : i64, tpu.core_type = #tpu.core_type<tc>} {
    %c0 = arith.constant 0 : index
    %c0_0 = arith.constant 0 : index
    %0 = vector.load %arg2[%c0, %c0_0] : memref<16x36xf32, #tpu.memory_space<vmem>>, vector<16x36xf32>
    %1 = math.absf %0 : vector<16x36xf32>
    %2 = vector.shape_cast %1 : vector<16x36xf32> to vector<1x16x36xf32>
    %cst = arith.constant dense<0.000000e+00> : vector<1xf32>
    %3 = vector.multi_reduction <add>, %2, %cst [1, 2] : vector<1x16x36xf32> to vector<1xf32>
    %4 = vector.shape_cast %3 : vector<1xf32> to vector<1x1x1xf32>
    %5 = vector.extract %4[0, 0, 0] : f32 from vector<1x1x1xf32>
    %cst_1 = arith.constant 5.760000e+02 : f32
    %6 = arith.divf %5, %cst_1 : f32
    %c0_2 = arith.constant 0 : index
    %7 = memref.load %arg0[%c0_2] : memref<2xf32, #tpu.memory_space<smem>>
    %c0_3 = arith.constant 0 : index
    %8 = memref.load %arg1[%c0_3] : memref<1xf32, #tpu.memory_space<smem>>
    %9 = arith.mulf %7, %8 : f32
    %c1 = arith.constant 1 : index
    %10 = memref.load %arg0[%c1] : memref<2xf32, #tpu.memory_space<smem>>
    %cst_4 = arith.constant 0.755928933 : f32
    %11 = arith.mulf %6, %cst_4 : f32
    %12 = arith.mulf %10, %11 : f32
    %13 = arith.addf %9, %12 : f32
    %c0_5 = arith.constant 0 : index
    %14 = memref.load %arg3[%c0_5] : memref<1xf32, #tpu.memory_space<smem>>
    memref.store %13, %arg3[%c0_5] : memref<1xf32, #tpu.memory_space<smem>>
    %cst_6 = arith.constant 1.000000e+00 : f32
    %15 = arith.divf %cst_6, %13 : f32
    %16 = vector.broadcast %15 : f32 to vector<16x36xf32>
    %17 = arith.mulf %0, %16 : vector<16x36xf32>
    %cst_7 = arith.constant -8.000000e+00 : f32
    %cst_8 = arith.constant 7.000000e+00 : f32
    %18 = vector.broadcast %cst_7 : f32 to vector<16x36xf32>
    %19 = arith.maximumf %18, %17 : vector<16x36xf32>
    %20 = vector.broadcast %cst_8 : f32 to vector<16x36xf32>
    %21 = arith.minimumf %20, %19 : vector<16x36xf32>
    %cst_9 = arith.constant 0.000000e+00 : f32
    %22 = vector.broadcast %cst_9 : f32 to vector<16x36xf32>
    %23 = arith.cmpf oge, %21, %22 : vector<16x36xf32>
    %cst_10 = arith.constant 5.000000e-01 : f32
    %24 = vector.broadcast %cst_10 : f32 to vector<16x36xf32>
    %25 = arith.addf %21, %24 : vector<16x36xf32>
    %26 = math.floor %25 : vector<16x36xf32>
    %cst_11 = arith.constant 5.000000e-01 : f32
    %27 = vector.broadcast %cst_11 : f32 to vector<16x36xf32>
    %28 = arith.subf %21, %27 : vector<16x36xf32>
    %29 = math.ceil %28 : vector<16x36xf32>
    %30 = arith.select %23, %26, %29 : vector<16x36xi1>, vector<16x36xf32>
    %31 = vector.broadcast %13 : f32 to vector<16x36xf32>
    %32 = arith.mulf %30, %31 : vector<16x36xf32>
    %c0_12 = arith.constant 0 : index
    %c0_13 = arith.constant 0 : index
    %33 = vector.load %arg4[%c0_12, %c0_13] : memref<16x36xf32, #tpu.memory_space<vmem>>, vector<16x36xf32>
    tpu.vector_store %arg4[%c0_12, %c0_13], %32 {strides = array<i32>} : memref<16x36xf32, #tpu.memory_space<vmem>>, vector<16x36xf32>,
    return
  }
}

</mosaic_0001>

<llo_original>
// kernel: tpu_custom_call.1
$region0: #{tpu_custom_call.1}
  #allocation0 [shape = 'u32[]', space=smem, size = 0x4, offset = 0x4, fixed_abs, tag = 'smem constant byte address 0x4 - core index']
  #allocation1 [shape = 'u32[144,128]{1,0:T(1,128)}', space=vmem, size = 0x12000, scoped, tag = 'internal scratch']
  #allocation2 [shape = 'f32[1]{0:T(128)S(6)}', space=smem, size = 0x200, scoped, tag = 'scoped memory for tpu_custom_call.1']
  %s0 = inlined_call_operand.vmem [shape: f32[2], index: 0, kind: input, shape index: {}]
  %s1 = inlined_call_operand.<no memory space> [shape: f32[1], index: 1, kind: input, shape index: {}]
  %s2 = inlined_call_operand.hbm [shape: f32[16,36], index: 2, kind: input, shape index: {}]
  %s3 = inlined_call_operand.hbm [shape: f32[1], index: 3, kind: output, shape index: {0}]
  %s4 = inlined_call_operand.hbm [shape: f32[16,36], index: 4, kind: output, shape index: {1}]
  %5 = xla_tuple %s3, %s4
  %s6 = sld [smem:[#allocation0]]
  $region38: #{tpu_custom_call.1} parent=0
    _
  %s8 = ssub.s32 1, %s6
  %s9 = scalar_select 0, %s8, %s6
  %10 = sst [smem:[#allocation2]] %s1
  $region1: #{tpu_custom_call.1} parent=0
    #allocation3 [shape = 'u8[512]{0}', space=smem, size = 0x200, scoped, tag = 'input window, operand 0, single buffered']
    #allocation4 [shape = 's32[1]{0}', space=sflag, size = 0x4, scoped, tag = 'scoped memory for tpu_custom_call.1']
    #allocation5 [shape = 's32[1]{0}', space=sflag, size = 0x4, scoped, tag = 'scoped memory for tpu_custom_call.1']
    #allocation6 [shape = 's32[1]{0}', space=sflag, size = 0x4, scoped, tag = 'scoped memory for tpu_custom_call.1']
    #allocation7 [shape = 's32[1]{0}', space=sflag, size = 0x4, scoped, tag = 'scoped memory for tpu_custom_call.1']
    #allocation8 [shape = 'u8[8192]{0}', space=vmem, size = 0x2000, scoped, tag = 'input window, operand 2, single buffered']
    #allocation9 [shape = 'u8[512]{0}', space=smem, size = 0x200, scoped, tag = 'output window, operand 0, single buffered']
    #allocation10 [shape = 'u8[8192]{0}', space=vmem, size = 0x2000, scoped, tag = 'output window, operand 1, single buffered']
    %11 = vsyncpa [#allocation7], 0
    %12 = vsyncpa [#allocation4], 0
    %13 = vsyncpa [#allocation6], 0
    %14 = vsyncpa [#allocation5], 0
    // Predicated region
    $region2: #{tpu_custom_call.1} parent=1 // pred_check
      _
    $region3: #{tpu_custom_call.1} parent=1 // pred_check_branch
      %16 = sbr.rel (0) target = $region5
    $region4: #{tpu_custom_call.1} parent=1 // pred_region
      %s18 = ssub.s32 16, 16
      %19 = vsyncadd [#allocation7], %s18
      %s21 = sshll.u32 %s0, 4
      %s22 = int_to_ptr.vmem [resolvable:$true] %s21
      %24 = dma.vmem_to_smem %s22, 16, [#allocation3], [#allocation7]
    $region5: #{tpu_custom_call.1} parent=1 // pred_fallthru
      _
    // Predicated region
    $region6: #{tpu_custom_call.1} parent=1 // pred_check
      _
    $region7: #{tpu_custom_call.1} parent=1 // pred_check_branch
      %26 = sbr.rel (0) target = $region9
    $region8: #{tpu_custom_call.1} parent=1 // pred_region
      _
    $region9: #{tpu_custom_call.1} parent=1 // pred_fallthru
      _
    // Predicated region
    $region10: #{tpu_custom_call.1} parent=1 // pred_check
      _
    $region11: #{tpu_custom_call.1} parent=1 // pred_check_branch
      %28 = sbr.rel (0) target = $region13
    $region12: #{tpu_custom_call.1} parent=1 // pred_region
      %s30 = ssub.s32 256, 256
      %31 = vsyncadd [#allocation4], %s30
      %s32 = sshll.u32 [#allocation8], 4
      %s33 = int_to_ptr.vmem [resolvable:$true] %s32
      %38 = dma.hbm_to_vmem [thread:$0]  %s2, 256, %s33, [#allocation4], 128, 128, 8
    $region13: #{tpu_custom_call.1} parent=1 // pred_fallthru
      _
    // Predicated region
    $region14: #{tpu_custom_call.1} parent=1 // pred_check
      _
    $region15: #{tpu_custom_call.1} parent=1 // pred_check_branch
      %40 = sbr.rel (0) target = $region17
    $region16: #{tpu_custom_call.1} parent=1 // pred_region
      %41 = dma.done [#allocation7], 16
    $region17: #{tpu_custom_call.1} parent=1 // pred_fallthru
      _
    // Predicated region
    $region18: #{tpu_custom_call.1} parent=1 // pred_check
      _
    $region19: #{tpu_custom_call.1} parent=1 // pred_check_branch
      %43 = sbr.rel (0) target = $region21
    $region20: #{tpu_custom_call.1} parent=1 // pred_region
      %44 = dma.done [#allocation4], 256
    $region21: #{tpu_custom_call.1} parent=1 // pred_fallthru
      _
    %45 = sfence
    %v46 = vld [vmem:[#allocation8] sm:$0xff]
    %v47 = vld [vmem:[#allocation8 + $0x8] sm:$0xff]
    %v48 = vand.u32 2147483647, %v46
    %v49 = vand.u32 2147483647, %v47
    %vm50 = vcmask 293888
    %v51 = vsel %vm50, %v48, 0.0
    %v52 = vsel %vm50, %v49, 0.0
    %v53 = vadd.f32 %v51, %v52
    %54 = vadd.xlane.f32.xlu0 %v53
    %v55 = vpop.xlane.xlu0 %54
    %v56 = vrot.slane %v55, 4
    %v57 = vadd.f32 %v55, %v56
    %v58 = vrot.slane %v57, 2
    %v59 = vadd.f32 %v57, %v58
    %v60 = vrot.slane %v59, 1
    %v61 = vadd.f32 %v59, %v60
    %s62 = vtos %v61
    %v63 = vrcp.pop 576.0
    %s64 = vtos %v63
    %s65 = smul.f32 %s62, %s64
    %s66 = sld [smem:[#allocation3]]
    %s67 = sld [smem:[#allocation2]]
    %s68 = smul.f32 %s66, %s67
    %s69 = sld [smem:[#allocation3 + $0x1]]
    %s70 = smul.f32 %s65, 0.75592893
    %s71 = smul.f32 %s69, %s70
    %s72 = sadd.f32 %s68, %s71
    %s73 = scalar_lea.smem [#allocation9], 0
    %74 = sst [smem:[%s73]] %s72
    %v75 = vstv %s72
    %v76 = vrcp.pop %v75
    %s77 = vtos %v76
    %v78 = vstv %s77
    %v79 = vmul.f32 %v46, %v78
    %v80 = vmul.f32 %v47, %v78
    %v81 = vmax.f32 %v79, -8.0
    %v82 = vmax.f32 %v80, -8.0
    %v83 = vmin.f32 %v81, 7.0
    %v84 = vmin.f32 %v82, 7.0
    %vm85 = vcmp.ge.f32.partialorder %v83, 0.0
    %vm86 = vcmp.ge.f32.partialorder %v84, 0.0
    %v87 = vadd.f32 %v83, 0.5
    %v88 = vadd.f32 %v84, 0.5
    %v89 = vfloor.f32 %v87
    %v90 = vfloor.f32 %v88
    %v91 = vsub.f32 %v83, 0.5
    %v92 = vsub.f32 %v84, 0.5
    %v93 = vceil.f32 %v91
    %v94 = vceil.f32 %v92
    %v95 = vsel %vm85, %v89, %v93
    %v96 = vsel %vm86, %v90, %v94
    %v97 = vstv %s72
    %v98 = vmul.f32 %v95, %v97
    %v99 = vmul.f32 %v96, %v97
    %100 = vst.msk [vmem:[#allocation10] sm:$0xff] %vm50, %v98
    %101 = vst.msk [vmem:[#allocation10 + $0x8] sm:$0xff] %vm50, %v99
    // Predicated region
    $region22: #{tpu_custom_call.1} parent=1 // pred_check
      _
    $region23: #{tpu_custom_call.1} parent=1 // pred_check_branch
      %103 = sbr.rel (0) target = $region25
    $region24: #{tpu_custom_call.1} parent=1 // pred_region
      %s105 = ssub.s32 16, 16
      %106 = vsyncadd [#allocation6], %s105
      %109 = dma.smem_to_hbm [#allocation9], 16, %s3, [#allocation6]
    $region25: #{tpu_custom_call.1} parent=1 // pred_fallthru
      _
    // Predicated region
    $region26: #{tpu_custom_call.1} parent=1 // pred_check
      _
    $region27: #{tpu_custom_call.1} parent=1 // pred_check_branch
      %111 = sbr.rel (0) target = $region29
    $region28: #{tpu_custom_call.1} parent=1 // pred_region
      %s113 = ssub.s32 256, 256
      %114 = vsyncadd [#allocation5], %s113
      %s115 = sshll.u32 [#allocation10], 4
      %s116 = int_to_ptr.vmem [resolvable:$true] %s115
      %121 = dma.vmem_to_hbm [thread:$0]  %s116, 256, %s4, [#allocation5], 128, 128, 8
    $region29: #{tpu_custom_call.1} parent=1 // pred_fallthru
      _
    // Predicated region
    $region30: #{tpu_custom_call.1} parent=1 // pred_check
      _
    $region31: #{tpu_custom_call.1} parent=1 // pred_check_branch
      %123 = sbr.rel (0) target = $region33
    $region32: #{tpu_custom_call.1} parent=1 // pred_region
      %124 = dma.done [#allocation6], 16
    $region33: #{tpu_custom_call.1} parent=1 // pred_fallthru
      _
    // Predicated region
    $region34: #{tpu_custom_call.1} parent=1 // pred_check
      _
    $region35: #{tpu_custom_call.1} parent=1 // pred_check_branch
      %126 = sbr.rel (0) target = $region37
    $region36: #{tpu_custom_call.1} parent=1 // pred_region
      %127 = dma.done [#allocation5], 256
    $region37: #{tpu_custom_call.1} parent=1 // pred_fallthru
      _
    %128 = sfence
    %129 = vsyncpa [#allocation4], 1
    %130 = vsyncpa [#allocation5], 1
    %131 = vsyncpa [#allocation6], 1
    %132 = vsyncpa [#allocation7], 1

</llo_original>
